<compile_context>
chip_gen: v7x
topology: tpu7x:2x2x1
jax: 0.10.0
libtpu: 0.0.40
codegen_flags: <defaults>
</compile_context>

<pallas_src>
import math

import jax
import jax.numpy as jnp
from jax.experimental import pallas as pl
from jax.experimental.pallas import tpu as pltpu


def _autoencoder_kernel(xT_ref, w1_ref, w2_ref, w3_ref,
                        w1t_ref, w2t_ref, w3t_ref, o_ref):
    xT = xT_ref[...]           # (F,  rt)  bf16
    w1 = w1_ref[...]           # (n1, F)   bf16
    w2 = w2_ref[...]           # (n2, n1)  bf16
    w3 = w3_ref[...]           # (n3, n2)  bf16
    w1t = w1t_ref[...]         # (F,  n1)  bf16
    w2t = w2t_ref[...]         # (n1, n2)  bf16
    w3t = w3t_ref[...]         # (n2, n3)  bf16

    def mm(w, a):
        return jnp.dot(w, a, preferred_element_type=jnp.float32)

    bf16 = jnp.bfloat16
    # encoder
    h1 = jnp.tanh(mm(w1, xT)).astype(bf16)       # (n1, rt)
    h2 = jnp.tanh(mm(w2, h1)).astype(bf16)       # (n2, rt)
    lat = jnp.tanh(mm(w3, h2)).astype(bf16)      # (n3, rt)
    # decoder (tied / transposed weights, per the PyTorch forward)
    d1 = jnp.tanh(mm(w3t, lat)).astype(bf16)     # (n2, rt)
    d2 = jnp.tanh(mm(w2t, d1)).astype(bf16)      # (n1, rt)
    out = jnp.tanh(mm(w1t, d2))                  # (F,  rt) f32
    o_ref[...] = out.astype(o_ref.dtype)


def dense_autoencoder_forward(x, w1, w2, w3, *, row_tile=None):
    """x: (B, T, F) float32. Returns (B, T, F) float32."""
    B, T, F = x.shape
    M = B * T

    if row_tile is None:
        if M >= 1024:
            row_tile = 512      # lane-dense, >= 2 grid steps (v7x dual-TC)
        elif M >= 256:
            row_tile = 128
        else:
            row_tile = M        # small problem: single full-extent tile

    num_tiles = -(-M // row_tile)
    Mp = num_tiles * row_tile

    x2d = x.reshape(M, F)
    if Mp != M:
        x2d = jnp.pad(x2d, ((0, Mp - M), (0, 0)))

    # Rows on the lane (last) axis; bf16 at the MXU inputs.
    xT = x2d.T.astype(jnp.bfloat16)               # (F, Mp)
    w1b = w1.astype(jnp.bfloat16)
    w2b = w2.astype(jnp.bfloat16)
    w3b = w3.astype(jnp.bfloat16)
    w1t, w2t, w3t = w1b.T, w2b.T, w3b.T           # pre-transposed once

    n1, _ = w1.shape
    n2, _ = w2.shape
    n3, _ = w3.shape

    const = lambda i: (0, 0)                      # weights stay resident

    outT = pl.pallas_call(
        _autoencoder_kernel,
        out_shape=jax.ShapeDtypeStruct((F, Mp), jnp.float32),
        grid_spec=pltpu.PrefetchScalarGridSpec(
            num_scalar_prefetch=0,
            grid=(num_tiles,),
            in_specs=[
                pl.BlockSpec((F, row_tile), lambda i: (0, i)),   # xT tile
                pl.BlockSpec((n1, F), const),                    # w1
                pl.BlockSpec((n2, n1), const),                   # w2
                pl.BlockSpec((n3, n2), const),                   # w3
                pl.BlockSpec((F, n1), const),                    # w1.T
                pl.BlockSpec((n1, n2), const),                   # w2.T
                pl.BlockSpec((n2, n3), const),                   # w3.T
            ],
            out_specs=pl.BlockSpec((F, row_tile), lambda i: (0, i)),
        ),
        compiler_params=pltpu.CompilerParams(
            dimension_semantics=("parallel",),
        ),
    )(xT, w1b, w2b, w3b, w1t, w2t, w3t)

    out2d = outT.T[:M]
    return out2d.reshape(B, T, F).astype(x.dtype)


def _semi_orthogonal(key, rows, cols):
    """Deterministic semi-orthogonal matrix mimicking torch's householder
    orthogonal parametrization: orthonormal rows if rows <= cols, otherwise
    orthonormal columns."""
    if rows >= cols:
        a = jax.random.normal(key, (rows, cols), dtype=jnp.float32)
        q, _ = jnp.linalg.qr(a)       # (rows, cols), orthonormal columns
        return q
    a = jax.random.normal(key, (cols, rows), dtype=jnp.float32)
    q, _ = jnp.linalg.qr(a)           # (cols, rows), orthonormal columns
    return q.T                        # (rows, cols), orthonormal rows


def make_params(features_in, features_out, key):
    difference = features_in - features_out
    n1 = math.ceil(features_in - difference * (2.0 / 3.0))
    n2 = math.ceil(features_in - difference * (1.0 / 3.0))
    k1, k2, k3 = jax.random.split(key, 3)
    w1 = _semi_orthogonal(k1, n1, features_in)     # (n1, F)
    w2 = _semi_orthogonal(k2, n2, n1)              # (n2, n1)
    w3 = _semi_orthogonal(k3, features_out, n2)    # (Fout, n2)
    return w1, w2, w3


def _reference_forward(x, w1, w2, w3):
    h1 = jnp.tanh(x @ w1.T)
    h2 = jnp.tanh(h1 @ w2.T)
    lat = jnp.tanh(h2 @ w3.T)
    d1 = jnp.tanh(lat @ w3)
    d2 = jnp.tanh(d1 @ w2)
    return jnp.tanh(d2 @ w1)


if __name__ == "__main__":
    features_in = 32
    features_out = 8
    batch, time = 2, 8   # M = 16 rows

    key = jax.random.PRNGKey(0)
    k_x, k_w = jax.random.split(key)

    x = jax.random.normal(k_x, (batch, time, features_in), dtype=jnp.float32)
    w1, w2, w3 = make_params(features_in, features_out, k_w)

    out = dense_autoencoder_forward(x, w1, w2, w3)
    out = jax.block_until_ready(out)

    ref = _reference_forward(x, w1, w2, w3)
    assert out.shape == (batch, time, features_in)
    max_err = float(jnp.max(jnp.abs(out - ref)))
    # bf16 MXU operands with f32 accumulation: tolerance relaxed accordingly.
    assert max_err < 3e-2, f"mismatch vs reference: max abs err {max_err}"

    print("KERNEL_OK")
</pallas_src>

<mosaic_0001>
module attributes {stable_mosaic.version = 11 : i64} {
  func.func @_autoencoder_kernel(%arg0: i32, %arg1: memref<32x16xbf16, #tpu.memory_space<vmem>>, %arg2: memref<16x32xbf16, #tpu.memory_space<vmem>>, %arg3: memref<24x16xbf16, #tpu.memory_space<vmem>>, %arg4: memref<8x24xbf16, #tpu.memory_space<vmem>>, %arg5: memref<32x16xbf16, #tpu.memory_space<vmem>>, %arg6: memref<16x24xbf16, #tpu.memory_space<vmem>>, %arg7: memref<24x8xbf16, #tpu.memory_space<vmem>>, %arg8: memref<32x16xf32, #tpu.memory_space<vmem>>) attributes {dimension_semantics = [#tpu.dimension_semantics<parallel>], iteration_bounds = array<i64: 1>, scalar_prefetch = 0 : i64, scratch_operands = 0 : i64, tpu.core_type = #tpu.core_type<tc>, window_params = [{transform_indices = @transform_0, window_bounds = array<i64: 32, 16>}, {pipeline_mode = #tpu.pipeline_mode<synchronous>, transform_indices = @transform_1, window_bounds = array<i64: 16, 32>}, {pipeline_mode = #tpu.pipeline_mode<synchronous>, transform_indices = @transform_2, window_bounds = array<i64: 24, 16>}, {pipeline_mode = #tpu.pipeline_mode<synchronous>, transform_indices = @transform_3, window_bounds = array<i64: 8, 24>}, {pipeline_mode = #tpu.pipeline_mode<synchronous>, transform_indices = @transform_4, window_bounds = array<i64: 32, 16>}, {pipeline_mode = #tpu.pipeline_mode<synchronous>, transform_indices = @transform_5, window_bounds = array<i64: 16, 24>}, {pipeline_mode = #tpu.pipeline_mode<synchronous>, transform_indices = @transform_6, window_bounds = array<i64: 24, 8>}, {transform_indices = @transform_7, window_bounds = array<i64: 32, 16>}]} {
    %c0 = arith.constant 0 : index
    %c0_0 = arith.constant 0 : index
    %0 = vector.load %arg1[%c0, %c0_0] : memref<32x16xbf16, #tpu.memory_space<vmem>>, vector<32x16xbf16>
    %c0_1 = arith.constant 0 : index
    %c0_2 = arith.constant 0 : index
    %1 = vector.load %arg2[%c0_1, %c0_2] : memref<16x32xbf16, #tpu.memory_space<vmem>>, vector<16x32xbf16>
    %c0_3 = arith.constant 0 : index
    %c0_4 = arith.constant 0 : index
    %2 = vector.load %arg3[%c0_3, %c0_4] : memref<24x16xbf16, #tpu.memory_space<vmem>>, vector<24x16xbf16>
    %c0_5 = arith.constant 0 : index
    %c0_6 = arith.constant 0 : index
    %3 = vector.load %arg4[%c0_5, %c0_6] : memref<8x24xbf16, #tpu.memory_space<vmem>>, vector<8x24xbf16>
    %c0_7 = arith.constant 0 : index
    %c0_8 = arith.constant 0 : index
    %4 = vector.load %arg5[%c0_7, %c0_8] : memref<32x16xbf16, #tpu.memory_space<vmem>>, vector<32x16xbf16>
    %c0_9 = arith.constant 0 : index
    %c0_10 = arith.constant 0 : index
    %5 = vector.load %arg6[%c0_9, %c0_10] : memref<16x24xbf16, #tpu.memory_space<vmem>>, vector<16x24xbf16>
    %c0_11 = arith.constant 0 : index
    %c0_12 = arith.constant 0 : index
    %6 = vector.load %arg7[%c0_11, %c0_12] : memref<24x8xbf16, #tpu.memory_space<vmem>>, vector<24x8xbf16>
    %cst = arith.constant dense<0.000000e+00> : vector<16x16xf32>
    %7 = tpu.matmul %1, %0, %cst {dimension_numbers = #tpu.dot_dimension_numbers<[1], [0], [0], [1], [0, 0, 1, 1], [], []>} : vector<16x32xbf16>, vector<32x16xbf16>, vector<16x16xf32> -> vector<16x16xf32>
    %8 = math.tanh %7 : vector<16x16xf32>
    %9 = arith.truncf %8 : vector<16x16xf32> to vector<16x16xbf16>
    %cst_13 = arith.constant dense<0.000000e+00> : vector<24x16xf32>
    %10 = tpu.matmul %2, %9, %cst_13 {dimension_numbers = #tpu.dot_dimension_numbers<[1], [0], [0], [1], [0, 0, 1, 1], [], []>} : vector<24x16xbf16>, vector<16x16xbf16>, vector<24x16xf32> -> vector<24x16xf32>
    %11 = math.tanh %10 : vector<24x16xf32>
    %12 = arith.truncf %11 : vector<24x16xf32> to vector<24x16xbf16>
    %cst_14 = arith.constant dense<0.000000e+00> : vector<8x16xf32>
    %13 = tpu.matmul %3, %12, %cst_14 {dimension_numbers = #tpu.dot_dimension_numbers<[1], [0], [0], [1], [0, 0, 1, 1], [], []>} : vector<8x24xbf16>, vector<24x16xbf16>, vector<8x16xf32> -> vector<8x16xf32>
    %14 = math.tanh %13 : vector<8x16xf32>
    %15 = arith.truncf %14 : vector<8x16xf32> to vector<8x16xbf16>
    %cst_15 = arith.constant dense<0.000000e+00> : vector<24x16xf32>
    %16 = tpu.matmul %6, %15, %cst_15 {dimension_numbers = #tpu.dot_dimension_numbers<[1], [0], [0], [1], [0, 0, 1, 1], [], []>} : vector<24x8xbf16>, vector<8x16xbf16>, vector<24x16xf32> -> vector<24x16xf32>
    %17 = math.tanh %16 : vector<24x16xf32>
    %18 = arith.truncf %17 : vector<24x16xf32> to vector<24x16xbf16>
    %cst_16 = arith.constant dense<0.000000e+00> : vector<16x16xf32>
    %19 = tpu.matmul %5, %18, %cst_16 {dimension_numbers = #tpu.dot_dimension_numbers<[1], [0], [0], [1], [0, 0, 1, 1], [], []>} : vector<16x24xbf16>, vector<24x16xbf16>, vector<16x16xf32> -> vector<16x16xf32>
    %20 = math.tanh %19 : vector<16x16xf32>
    %21 = arith.truncf %20 : vector<16x16xf32> to vector<16x16xbf16>
    %cst_17 = arith.constant dense<0.000000e+00> : vector<32x16xf32>
    %22 = tpu.matmul %4, %21, %cst_17 {dimension_numbers = #tpu.dot_dimension_numbers<[1], [0], [0], [1], [0, 0, 1, 1], [], []>} : vector<32x16xbf16>, vector<16x16xbf16>, vector<32x16xf32> -> vector<32x16xf32>
    %23 = math.tanh %22 : vector<32x16xf32>
    %c0_18 = arith.constant 0 : index
    %c0_19 = arith.constant 0 : index
    %24 = vector.load %arg8[%c0_18, %c0_19] : memref<32x16xf32, #tpu.memory_space<vmem>>, vector<32x16xf32>
    tpu.vector_store %arg8[%c0_18, %c0_19], %23 {strides = array<i32>} : memref<32x16xf32, #tpu.memory_space<vmem>>, vector<32x16xf32>,
    return
  }
  func.func @transform_0(%arg0: i32) -> (i32, i32) {
    %c0_i32 = arith.constant 0 : i32
    %c0_i32_0 = arith.constant 0 : i32
    return %c0_i32, %arg0 : i32, i32
  }
  func.func @transform_1(%arg0: i32) -> (i32, i32) {
    %c0_i32 = arith.constant 0 : i32
    %c0_i32_0 = arith.constant 0 : i32
    %c0_i32_1 = arith.constant 0 : i32
    return %c0_i32, %c0_i32_0 : i32, i32
  }
  func.func @transform_2(%arg0: i32) -> (i32, i32) {
    %c0_i32 = arith.constant 0 : i32
    %c0_i32_0 = arith.constant 0 : i32
    %c0_i32_1 = arith.constant 0 : i32
    return %c0_i32, %c0_i32_0 : i32, i32
  }
  func.func @transform_3(%arg0: i32) -> (i32, i32) {
    %c0_i32 = arith.constant 0 : i32
    %c0_i32_0 = arith.constant 0 : i32
    %c0_i32_1 = arith.constant 0 : i32
    return %c0_i32, %c0_i32_0 : i32, i32
  }
  func.func @transform_4(%arg0: i32) -> (i32, i32) {
    %c0_i32 = arith.constant 0 : i32
    %c0_i32_0 = arith.constant 0 : i32
    %c0_i32_1 = arith.constant 0 : i32
    return %c0_i32, %c0_i32_0 : i32, i32
  }
  func.func @transform_5(%arg0: i32) -> (i32, i32) {
    %c0_i32 = arith.constant 0 : i32
    %c0_i32_0 = arith.constant 0 : i32
    %c0_i32_1 = arith.constant 0 : i32
    return %c0_i32, %c0_i32_0 : i32, i32
  }
  func.func @transform_6(%arg0: i32) -> (i32, i32) {
    %c0_i32 = arith.constant 0 : i32
    %c0_i32_0 = arith.constant 0 : i32
    %c0_i32_1 = arith.constant 0 : i32
    return %c0_i32, %c0_i32_0 : i32, i32
  }
  func.func @transform_7(%arg0: i32) -> (i32, i32) {
    %c0_i32 = arith.constant 0 : i32
    %c0_i32_0 = arith.constant 0 : i32
    return %c0_i32, %arg0 : i32, i32
  }
}

</mosaic_0001>

<llo_original>
// kernel: tpu_custom_call.1
$region0: #{tpu_custom_call.1}
  #allocation0 [shape = 'u32[]', space=smem, size = 0x4, offset = 0x4, fixed_abs, tag = 'smem constant byte address 0x4 - core index']
  #allocation1 [shape = 'u32[144,128]{1,0:T(1,128)}', space=vmem, size = 0x12000, scoped, tag = 'internal scratch']
  %s0 = inlined_call_operand.vmem [shape: bf16[32,16], index: 0, kind: input, shape index: {}]
  %s1 = inlined_call_operand.vmem [shape: bf16[16,32], index: 1, kind: input, shape index: {}]
  %s2 = inlined_call_operand.vmem [shape: bf16[24,16], index: 2, kind: input, shape index: {}]
  %s3 = inlined_call_operand.vmem [shape: bf16[8,24], index: 3, kind: input, shape index: {}]
  %s4 = inlined_call_operand.vmem [shape: bf16[32,16], index: 4, kind: input, shape index: {}]
  %s5 = inlined_call_operand.vmem [shape: bf16[16,24], index: 5, kind: input, shape index: {}]
  %s6 = inlined_call_operand.vmem [shape: bf16[24,8], index: 6, kind: input, shape index: {}]
  %s7 = inlined_call_operand.vmem [shape: f32[32,16], index: 7, kind: output, shape index: {}]
  %s8 = sld [smem:[#allocation0]]
  $region38: #{tpu_custom_call.1} parent=0
    _
  %s10 = ssub.s32 1, %s8
  %s11 = scalar_select 0, %s10, %s8
  // Predicated region
  $region2: #{tpu_custom_call.1} parent=0 // pred_check
    _
  $region3: #{tpu_custom_call.1} parent=0 // pred_check_branch
    %13 = sbr.rel (0) target = $region5
  $region4: #{tpu_custom_call.1} parent=0 // pred_region
    _
  $region5: #{tpu_custom_call.1} parent=0 // pred_fallthru
    _
  // Predicated region
  $region6: #{tpu_custom_call.1} parent=0 // pred_check
    _
  $region7: #{tpu_custom_call.1} parent=0 // pred_check_branch
    %15 = sbr.rel (0) target = $region9
  $region8: #{tpu_custom_call.1} parent=0 // pred_region
    _
  $region9: #{tpu_custom_call.1} parent=0 // pred_fallthru
    _
  // Predicated region
  $region10: #{tpu_custom_call.1} parent=0 // pred_check
    _
  $region11: #{tpu_custom_call.1} parent=0 // pred_check_branch
    %17 = sbr.rel (0) target = $region13
  $region12: #{tpu_custom_call.1} parent=0 // pred_region
    _
  $region13: #{tpu_custom_call.1} parent=0 // pred_fallthru
    _
  // Predicated region
  $region14: #{tpu_custom_call.1} parent=0 // pred_check
    _
  $region15: #{tpu_custom_call.1} parent=0 // pred_check_branch
    %19 = sbr.rel (0) target = $region17
  $region16: #{tpu_custom_call.1} parent=0 // pred_region
    _
  $region17: #{tpu_custom_call.1} parent=0 // pred_fallthru
    _
  // Predicated region
  $region18: #{tpu_custom_call.1} parent=0 // pred_check
    _
  $region19: #{tpu_custom_call.1} parent=0 // pred_check_branch
    %21 = sbr.rel (0) target = $region21
  $region20: #{tpu_custom_call.1} parent=0 // pred_region
    _
  $region21: #{tpu_custom_call.1} parent=0 // pred_fallthru
    _
  // Predicated region
  $region22: #{tpu_custom_call.1} parent=0 // pred_check
    _
  $region23: #{tpu_custom_call.1} parent=0 // pred_check_branch
    %23 = sbr.rel (0) target = $region25
  $region24: #{tpu_custom_call.1} parent=0 // pred_region
    _
  $region25: #{tpu_custom_call.1} parent=0 // pred_fallthru
    _
  // Predicated region
  $region26: #{tpu_custom_call.1} parent=0 // pred_check
    _
  $region27: #{tpu_custom_call.1} parent=0 // pred_check_branch
    %25 = sbr.rel (0) target = $region29
  $region28: #{tpu_custom_call.1} parent=0 // pred_region
    _
  $region29: #{tpu_custom_call.1} parent=0 // pred_fallthru
    _
  %v27 = vld [vmem:[%s0] sm:$0xf]
  %v28 = vld [vmem:[%s0 + $0x4] sm:$0xf]
  %v29 = vld [vmem:[%s0 + $0x8] sm:$0xf]
  %v30 = vld [vmem:[%s0 + $0xc] sm:$0xf]
  %v31 = vld [vmem:[%s1] sm:$0xf]
  %v32 = vld [vmem:[%s1 + $0x4] sm:$0xf]
  %v33 = vld [vmem:[%s2] sm:$0xf]
  %v34 = vld [vmem:[%s2 + $0x4] sm:$0xf]
  %v35 = vld [vmem:[%s2 + $0x8] sm:$0xf]
  %v36 = vld [vmem:[%s3] sm:$0xf]
  %v37 = vld [vmem:[%s4] sm:$0xf]
  %v38 = vld [vmem:[%s4 + $0x4] sm:$0xf]
  %v39 = vld [vmem:[%s4 + $0x8] sm:$0xf]
  %v40 = vld [vmem:[%s4 + $0xc] sm:$0xf]
  %v41 = vld [vmem:[%s5] sm:$0xf]
  %v42 = vld [vmem:[%s5 + $0x4] sm:$0xf]
  %v43 = vld [vmem:[%s6] sm:$0xf]
  %v44 = vld [vmem:[%s6 + $0x4] sm:$0xf]
  %v45 = vld [vmem:[%s6 + $0x8] sm:$0xf]
  %v48 = vunpack.c.l.b16 %v31
  %v49 = vunpack.c.l.b16 %v32
  %v50 = vpack.c.b16 %v49, %v48
  %v55 = vunpack.c.l.b16 %v27
  %v56 = vunpack.c.l.b16 %v28
  %v57 = vunpack.c.l.b16 %v29
  %v58 = vunpack.c.l.b16 %v30
  %v59 = vpack.c.b16 %v56, %v55
  %v60 = vpack.c.b16 %v58, %v57
  %vm63 = vcmask 261120
  %v65 = vsel %vm63, %v50, 0
  %67 = vmatprep.subr.bf16.mxu0 0
  %68 = vmatpush1.bf16.msra.mxu0 %v59
  %69 = vmatprep.subr.bf16.mxu0 0
  %70 = vmatpush1.bf16.msra.mxu0 %v60
  %71 = vmatprep.subr.bf16.mxu0 0
  %72 = vmatpush1.bf16.msra.mxu0 0
  %73 = vmatprep.subr.bf16.mxu0 0
  %74 = vmatpush1.bf16.msra.mxu0 0
  %75 = vmatprep.subr.bf16.mxu0 0
  %76 = vmatpush1.bf16.msra.mxu0 0
  %77 = vmatprep.subr.bf16.mxu0 0
  %78 = vmatpush1.bf16.msra.mxu0 0
  %79 = vmatprep.subr.bf16.mxu0 0
  %80 = vmatpush1.bf16.msra.mxu0 0
  %81 = vmatprep.subr.bf16.mxu0 0
  %82 = vmatpush1.bf16.msra.mxu0 0
  %83 = vmatprep.subr.bf16.mxu0 0
  %84 = vmatpush1.bf16.msra.mxu0 0
  %85 = vmatprep.subr.bf16.mxu0 0
  %86 = vmatpush1.bf16.msra.mxu0 0
  %87 = vmatprep.subr.bf16.mxu0 0
  %88 = vmatpush1.bf16.msra.mxu0 0
  %89 = vmatprep.subr.bf16.mxu0 0
  %90 = vmatpush1.bf16.msra.mxu0 0
  %91 = vmatprep.subr.bf16.mxu0 0
  %92 = vmatpush1.bf16.msra.mxu0 0
  %93 = vmatprep.subr.bf16.mxu0 0
  %94 = vmatpush1.bf16.msra.mxu0 0
  %95 = vmatprep.subr.bf16.mxu0 0
  %96 = vmatpush1.bf16.msra.mxu0 0
  %97 = vmatprep.subr.bf16.mxu0 0
  %98 = vmatpush1.bf16.msra.mxu0 0
  %99 = vmatprep.mubr.bf16.mxu0 0
  %100 = vmatmul.mubr.bf16.gmra.mrb[0].mxu0 %v65
  %v101 = vpop.f32.mrb[0].mxu0
  %v102 = vadd.f32 0.0, %v101
  %v103 = vpop.f32.mrb[0].mxu0
  %v104 = vpop.f32.mrb[0].mxu0
  %v105 = vadd.f32 0.0, %v104
  %v106 = vpop.f32.mrb[0].mxu0
  %107 = vdwg.mxu0
  %v108 = vtanh.pop %v102
  %v109 = vtanh.pop %v105
  %v110 = vpack.c.bf16 %v109, %v108
  %v114 = vunpack.c.l.b16 %v33
  %v115 = vunpack.c.l.b16 %v34
  %v116 = vunpack.c.l.b16 %v35
  %v117 = vpack.c.b16 %v115, %v114
  %v118 = vpack.c.b16 %v116, %v116
  %vm119 = vcmask 130048
  %v121 = vsel %vm119, %v117, 0
  %v124 = vsel %vm119, %v118, 0
  %126 = vmatprep.subr.bf16.mxu0 0
  %127 = vmatpush1.bf16.msra.mxu0 %v110
  %128 = vmatprep.subr.bf16.mxu0 0
  %129 = vmatpush1.bf16.msra.mxu0 0
  %130 = vmatprep.subr.bf16.mxu0 0
  %131 = vmatpush1.bf16.msra.mxu0 0
  %132 = vmatprep.subr.bf16.mxu0 0
  %133 = vmatpush1.bf16.msra.mxu0 0
  %134 = vmatprep.subr.bf16.mxu0 0
  %135 = vmatpush1.bf16.msra.mxu0 0
  %136 = vmatprep.subr.bf16.mxu0 0
  %137 = vmatpush1.bf16.msra.mxu0 0
  %138 = vmatprep.subr.bf16.mxu0 0
  %139 = vmatpush1.bf16.msra.mxu0 0
  %140 = vmatprep.subr.bf16.mxu0 0
  %141 = vmatpush1.bf16.msra.mxu0 0
  %142 = vmatprep.subr.bf16.mxu0 0
  %143 = vmatpush1.bf16.msra.mxu0 0
  %144 = vmatprep.subr.bf16.mxu0 0
  %145 = vmatpush1.bf16.msra.mxu0 0
  %146 = vmatprep.subr.bf16.mxu0 0
  %147 = vmatpush1.bf16.msra.mxu0 0
  %148 = vmatprep.subr.bf16.mxu0 0
  %149 = vmatpush1.bf16.msra.mxu0 0
  %150 = vmatprep.subr.bf16.mxu0 0
  %151 = vmatpush1.bf16.msra.mxu0 0
  %152 = vmatprep.subr.bf16.mxu0 0
  %153 = vmatpush1.bf16.msra.mxu0 0
  %154 = vmatprep.subr.bf16.mxu0 0
  %155 = vmatpush1.bf16.msra.mxu0 0
  %156 = vmatprep.subr.bf16.mxu0 0
  %157 = vmatpush1.bf16.msra.mxu0 0
  %158 = vmatprep.mubr.bf16.mxu0 0
  %159 = vmatmul.mubr.bf16.gmra.mrb[0].mxu0 %v121
  %v160 = vpop.f32.mrb[0].mxu0
  %v161 = vadd.f32 0.0, %v160
  %v162 = vpop.f32.mrb[0].mxu0
  %v163 = vpop.f32.mrb[0].mxu0
  %v164 = vadd.f32 0.0, %v163
  %v165 = vpop.f32.mrb[0].mxu0
  %166 = vmatprep.mubr.bf16.mxu0 0
  %167 = vmatmul.mubr.bf16.gmra.mrb[0].mxu0 %v124
  %v168 = vpop.f32.mrb[0].mxu0
  %v169 = vadd.f32 0.0, %v168
  %v170 = vpop.f32.mrb[0].mxu0
  %v171 = vpop.f32.mrb[0].mxu0
  %v172 = vpop.f32.mrb[0].mxu0
  %173 = vdwg.mxu0
  %v174 = vtanh.pop %v161
  %v175 = vtanh.pop %v164
  %v176 = vtanh.pop %v169
  %v177 = vpack.c.bf16 %v175, %v174
  %v178 = vpack.c.bf16 %v176, %v176
  %vm179 = vcmask 195584
  %v181 = vsel %vm179, %v36, 0
  %vm183 = vcmask 1043456
  %v185 = vsel %vm183, %v178, 0
  %187 = vmatprep.subr.bf16.mxu0 0
  %188 = vmatpush1.bf16.msra.mxu0 %v177
  %189 = vmatprep.subr.bf16.mxu0 0
  %190 = vmatpush1.bf16.msra.mxu0 %v185
  %191 = vmatprep.subr.bf16.mxu0 0
  %192 = vmatpush1.bf16.msra.mxu0 0
  %193 = vmatprep.subr.bf16.mxu0 0
  %194 = vmatpush1.bf16.msra.mxu0 0
  %195 = vmatprep.subr.bf16.mxu0 0
  %196 = vmatpush1.bf16.msra.mxu0 0
  %197 = vmatprep.subr.bf16.mxu0 0
  %198 = vmatpush1.bf16.msra.mxu0 0
  %199 = vmatprep.subr.bf16.mxu0 0
  %200 = vmatpush1.bf16.msra.mxu0 0
  %201 = vmatprep.subr.bf16.mxu0 0
  %202 = vmatpush1.bf16.msra.mxu0 0
  %203 = vmatprep.subr.bf16.mxu0 0
  %204 = vmatpush1.bf16.msra.mxu0 0
  %205 = vmatprep.subr.bf16.mxu0 0
  %206 = vmatpush1.bf16.msra.mxu0 0
  %207 = vmatprep.subr.bf16.mxu0 0
  %208 = vmatpush1.bf16.msra.mxu0 0
  %209 = vmatprep.subr.bf16.mxu0 0
  %210 = vmatpush1.bf16.msra.mxu0 0
  %211 = vmatprep.subr.bf16.mxu0 0
  %212 = vmatpush1.bf16.msra.mxu0 0
  %213 = vmatprep.subr.bf16.mxu0 0
  %214 = vmatpush1.bf16.msra.mxu0 0
  %215 = vmatprep.subr.bf16.mxu0 0
  %216 = vmatpush1.bf16.msra.mxu0 0
  %217 = vmatprep.subr.bf16.mxu0 0
  %218 = vmatpush1.bf16.msra.mxu0 0
  %219 = vmatprep.mubr.bf16.mxu0 0
  %220 = vmatmul.mubr.bf16.gmra.mrb[0].mxu0 %v181
  %v221 = vpop.f32.mrb[0].mxu0
  %v222 = vadd.f32 0.0, %v221
  %v223 = vpop.f32.mrb[0].mxu0
  %v224 = vpop.f32.mrb[0].mxu0
  %v225 = vpop.f32.mrb[0].mxu0
  %226 = vdwg.mxu0
  %v227 = vtanh.pop %v222
  %v228 = vpack.c.bf16 %v227, %v227
  %v232 = vunpack.c.l.b16 %v43
  %v233 = vunpack.c.l.b16 %v44
  %v234 = vunpack.c.l.b16 %v45
  %v235 = vpack.c.b16 %v233, %v232
  %v236 = vpack.c.b16 %v234, %v234
  %vm237 = vcmask 64512
  %v239 = vsel %vm237, %v235, 0
  %v242 = vsel %vm237, %v236, 0
  %v245 = vsel %vm183, %v228, 0
  %247 = vmatprep.subr.bf16.mxu0 0
  %248 = vmatpush1.bf16.msra.mxu0 %v245
  %249 = vmatprep.subr.bf16.mxu0 0
  %250 = vmatpush1.bf16.msra.mxu0 0
  %251 = vmatprep.subr.bf16.mxu0 0
  %252 = vmatpush1.bf16.msra.mxu0 0
  %253 = vmatprep.subr.bf16.mxu0 0
  %254 = vmatpush1.bf16.msra.mxu0 0
  %255 = vmatprep.subr.bf16.mxu0 0
  %256 = vmatpush1.bf16.msra.mxu0 0
  %257 = vmatprep.subr.bf16.mxu0 0
  %258 = vmatpush1.bf16.msra.mxu0 0
  %259 = vmatprep.subr.bf16.mxu0 0
  %260 = vmatpush1.bf16.msra.mxu0 0
  %261 = vmatprep.subr.bf16.mxu0 0
  %262 = vmatpush1.bf16.msra.mxu0 0
  %263 = vmatprep.subr.bf16.mxu0 0
  %264 = vmatpush1.bf16.msra.mxu0 0
  %265 = vmatprep.subr.bf16.mxu0 0
  %266 = vmatpush1.bf16.msra.mxu0 0
  %267 = vmatprep.subr.bf16.mxu0 0
  %268 = vmatpush1.bf16.msra.mxu0 0
  %269 = vmatprep.subr.bf16.mxu0 0
  %270 = vmatpush1.bf16.msra.mxu0 0
  %271 = vmatprep.subr.bf16.mxu0 0
  %272 = vmatpush1.bf16.msra.mxu0 0
  %273 = vmatprep.subr.bf16.mxu0 0
  %274 = vmatpush1.bf16.msra.mxu0 0
  %275 = vmatprep.subr.bf16.mxu0 0
  %276 = vmatpush1.bf16.msra.mxu0 0
  %277 = vmatprep.subr.bf16.mxu0 0
  %278 = vmatpush1.bf16.msra.mxu0 0
  %279 = vmatprep.mubr.bf16.mxu0 0
  %280 = vmatmul.mubr.bf16.gmra.mrb[0].mxu0 %v239
  %v281 = vpop.f32.mrb[0].mxu0
  %v282 = vadd.f32 0.0, %v281
  %v283 = vpop.f32.mrb[0].mxu0
  %v284 = vpop.f32.mrb[0].mxu0
  %v285 = vadd.f32 0.0, %v284
  %v286 = vpop.f32.mrb[0].mxu0
  %287 = vmatprep.mubr.bf16.mxu0 0
  %288 = vmatmul.mubr.bf16.gmra.mrb[0].mxu0 %v242
  %v289 = vpop.f32.mrb[0].mxu0
  %v290 = vadd.f32 0.0, %v289
  %v291 = vpop.f32.mrb[0].mxu0
  %v292 = vpop.f32.mrb[0].mxu0
  %v293 = vpop.f32.mrb[0].mxu0
  %294 = vdwg.mxu0
  %v295 = vtanh.pop %v282
  %v296 = vtanh.pop %v285
  %v297 = vtanh.pop %v290
  %v298 = vpack.c.bf16 %v296, %v295
  %v299 = vpack.c.bf16 %v297, %v297
  %v302 = vunpack.c.l.b16 %v41
  %v303 = vunpack.c.l.b16 %v42
  %v304 = vpack.c.b16 %v303, %v302
  %v306 = vsel %vm179, %v304, 0
  %v309 = vsel %vm183, %v299, 0
  %311 = vmatprep.subr.bf16.mxu0 0
  %312 = vmatpush1.bf16.msra.mxu0 %v298
  %313 = vmatprep.subr.bf16.mxu0 0
  %314 = vmatpush1.bf16.msra.mxu0 %v309
  %315 = vmatprep.subr.bf16.mxu0 0
  %316 = vmatpush1.bf16.msra.mxu0 0
  %317 = vmatprep.subr.bf16.mxu0 0
  %318 = vmatpush1.bf16.msra.mxu0 0
  %319 = vmatprep.subr.bf16.mxu0 0
  %320 = vmatpush1.bf16.msra.mxu0 0
  %321 = vmatprep.subr.bf16.mxu0 0
  %322 = vmatpush1.bf16.msra.mxu0 0
  %323 = vmatprep.subr.bf16.mxu0 0
  %324 = vmatpush1.bf16.msra.mxu0 0
  %325 = vmatprep.subr.bf16.mxu0 0
  %326 = vmatpush1.bf16.msra.mxu0 0
  %327 = vmatprep.subr.bf16.mxu0 0
  %328 = vmatpush1.bf16.msra.mxu0 0
  %329 = vmatprep.subr.bf16.mxu0 0
  %330 = vmatpush1.bf16.msra.mxu0 0
  %331 = vmatprep.subr.bf16.mxu0 0
  %332 = vmatpush1.bf16.msra.mxu0 0
  %333 = vmatprep.subr.bf16.mxu0 0
  %334 = vmatpush1.bf16.msra.mxu0 0
  %335 = vmatprep.subr.bf16.mxu0 0
  %336 = vmatpush1.bf16.msra.mxu0 0
  %337 = vmatprep.subr.bf16.mxu0 0
  %338 = vmatpush1.bf16.msra.mxu0 0
  %339 = vmatprep.subr.bf16.mxu0 0
  %340 = vmatpush1.bf16.msra.mxu0 0
  %341 = vmatprep.subr.bf16.mxu0 0
  %342 = vmatpush1.bf16.msra.mxu0 0
  %343 = vmatprep.mubr.bf16.mxu0 0
  %344 = vmatmul.mubr.bf16.gmra.mrb[0].mxu0 %v306
  %v345 = vpop.f32.mrb[0].mxu0
  %v346 = vadd.f32 0.0, %v345
  %v347 = vpop.f32.mrb[0].mxu0
  %v348 = vpop.f32.mrb[0].mxu0
  %v349 = vadd.f32 0.0, %v348
  %v350 = vpop.f32.mrb[0].mxu0
  %351 = vdwg.mxu0
  %v352 = vtanh.pop %v346
  %v353 = vtanh.pop %v349
  %v354 = vpack.c.bf16 %v353, %v352
  %v359 = vunpack.c.l.b16 %v37
  %v360 = vunpack.c.l.b16 %v38
  %v361 = vunpack.c.l.b16 %v39
  %v362 = vunpack.c.l.b16 %v40
  %v363 = vpack.c.b16 %v360, %v359
  %v364 = vpack.c.b16 %v362, %v361
  %v366 = vsel %vm119, %v363, 0
  %v369 = vsel %vm119, %v364, 0
  %371 = vmatprep.subr.bf16.mxu0 0
  %372 = vmatpush1.bf16.msra.mxu0 %v354
  %373 = vmatprep.subr.bf16.mxu0 0
  %374 = vmatpush1.bf16.msra.mxu0 0
  %375 = vmatprep.subr.bf16.mxu0 0
  %376 = vmatpush1.bf16.msra.mxu0 0
  %377 = vmatprep.subr.bf16.mxu0 0
  %378 = vmatpush1.bf16.msra.mxu0 0
  %379 = vmatprep.subr.bf16.mxu0 0
  %380 = vmatpush1.bf16.msra.mxu0 0
  %381 = vmatprep.subr.bf16.mxu0 0
  %382 = vmatpush1.bf16.msra.mxu0 0
  %383 = vmatprep.subr.bf16.mxu0 0
  %384 = vmatpush1.bf16.msra.mxu0 0
  %385 = vmatprep.subr.bf16.mxu0 0
  %386 = vmatpush1.bf16.msra.mxu0 0
  %387 = vmatprep.subr.bf16.mxu0 0
  %388 = vmatpush1.bf16.msra.mxu0 0
  %389 = vmatprep.subr.bf16.mxu0 0
  %390 = vmatpush1.bf16.msra.mxu0 0
  %391 = vmatprep.subr.bf16.mxu0 0
  %392 = vmatpush1.bf16.msra.mxu0 0
  %393 = vmatprep.subr.bf16.mxu0 0
  %394 = vmatpush1.bf16.msra.mxu0 0
  %395 = vmatprep.subr.bf16.mxu0 0
  %396 = vmatpush1.bf16.msra.mxu0 0
  %397 = vmatprep.subr.bf16.mxu0 0
  %398 = vmatpush1.bf16.msra.mxu0 0
  %399 = vmatprep.subr.bf16.mxu0 0
  %400 = vmatpush1.bf16.msra.mxu0 0
  %401 = vmatprep.subr.bf16.mxu0 0
  %402 = vmatpush1.bf16.msra.mxu0 0
  %403 = vmatprep.mubr.bf16.mxu0 0
  %404 = vmatmul.mubr.bf16.gmra.mrb[0].mxu0 %v366
  %v405 = vpop.f32.mrb[0].mxu0
  %v406 = vadd.f32 0.0, %v405
  %v407 = vpop.f32.mrb[0].mxu0
  %v408 = vpop.f32.mrb[0].mxu0
  %v409 = vadd.f32 0.0, %v408
  %v410 = vpop.f32.mrb[0].mxu0
  %411 = vmatprep.mubr.bf16.mxu0 0
  %412 = vmatmul.mubr.bf16.gmra.mrb[0].mxu0 %v369
  %v413 = vpop.f32.mrb[0].mxu0
  %v414 = vadd.f32 0.0, %v413
  %v415 = vpop.f32.mrb[0].mxu0
  %v416 = vpop.f32.mrb[0].mxu0
  %v417 = vadd.f32 0.0, %v416
  %v418 = vpop.f32.mrb[0].mxu0
  %419 = vdwg.mxu0
  %v420 = vtanh.pop %v406
  %v421 = vtanh.pop %v409
  %v422 = vtanh.pop %v414
  %v423 = vtanh.pop %v417
  %424 = vst.msk [vmem:[%s7] sm:$0xff] %vm119, %v420
  %425 = vst.msk [vmem:[%s7 + $0x8] sm:$0xff] %vm119, %v421
  %426 = vst.msk [vmem:[%s7 + $0x10] sm:$0xff] %vm119, %v422
  %427 = vst.msk [vmem:[%s7 + $0x18] sm:$0xff] %vm119, %v423
  // Predicated region
  $region30: #{tpu_custom_call.1} parent=0 // pred_check
    _
  $region31: #{tpu_custom_call.1} parent=0 // pred_check_branch
    %429 = sbr.rel (0) target = $region33
  $region32: #{tpu_custom_call.1} parent=0 // pred_region
    _
  $region33: #{tpu_custom_call.1} parent=0 // pred_fallthru
    _
  // Predicated region
  $region34: #{tpu_custom_call.1} parent=0 // pred_check
    _
  $region35: #{tpu_custom_call.1} parent=0 // pred_check_branch
    %431 = sbr.rel (0) target = $region37
  $region36: #{tpu_custom_call.1} parent=0 // pred_region
    _
  $region37: #{tpu_custom_call.1} parent=0 // pred_fallthru
    _

</llo_original>
